<compile_context>
chip_gen: v7x
topology: tpu7x:2x2x1
jax: 0.10.0
libtpu: 0.0.40
codegen_flags: <defaults>
</compile_context>

<pallas_src>
import jax
import jax.numpy as jnp
from jax.experimental import pallas as pl
from jax.experimental.pallas import tpu as pltpu

BN_EPS = 1e-5


def _round_up(n, m):
    return ((n + m - 1) // m) * m


def _choose_batch_tile(B, block_b):
    """Multiple-of-8 batch tile minimizing padding waste; >=2 grid steps when B > 8
    so the 'parallel' batch axis can be sharded across v7x's two TensorCores."""
    if B <= 8:
        return _round_up(max(B, 1), 8)
    max_tb = max(8, min(block_b, _round_up(_round_up(B, 8) // 2, 8)))
    best_tb, best_pad = 8, _round_up(B, 8) - B
    for tb in range(8, max_tb + 1, 8):
        pad = _round_up(B, tb) - B
        if pad < best_pad or (pad == best_pad and tb > best_tb):
            best_tb, best_pad = tb, pad
    return best_tb


def classblock_kernel(x_ref, w1_ref, b1_ref, w2_ref, b2_ref, out_ref, h_ref):
    # ---- Bottleneck Linear (eval-mode BatchNorm pre-folded into w1/b1). ----
    # Class-tile invariant: compute once per batch tile (j == 0), cache in VMEM scratch.
    @pl.when(pl.program_id(1) == 0)
    def _():
        h = jnp.dot(x_ref[...], w1_ref[...], preferred_element_type=jnp.float32)
        h_ref[...] = (h + b1_ref[...]).astype(h_ref.dtype)

    # relu=False -> no LeakyReLU; Dropout is identity in eval mode.
    # ---- Classifier Linear on the current class tile. ----
    out = jnp.dot(h_ref[...], w2_ref[...], preferred_element_type=jnp.float32)
    out_ref[...] = (out + b2_ref[...]).astype(out_ref.dtype)


def prepare_classblock_params(params, *, class_tile=512):
    """One-time fold of eval-mode BatchNorm into the first Linear plus padding / bf16 cast.
    Call once and reuse the result for every forward call (serving-style inference)."""
    w1 = jnp.asarray(params["w1"], jnp.float32)   # (D, Nb)  (stored as W^T)
    b1 = jnp.asarray(params["b1"], jnp.float32)
    w2 = jnp.asarray(params["w2"], jnp.float32)   # (Nb, C)  (stored as W^T)
    b2 = jnp.asarray(params["b2"], jnp.float32)
    D, Nb = w1.shape
    C = w2.shape[1]

    # Fold BN: w1' = w1 * gamma*rsqrt(var+eps), b1' = (b1-mean)*scale + beta  (exact in eval mode)
    scale = params["gamma"] * jax.lax.rsqrt(params["running_var"] + BN_EPS)   # (Nb,)
    w1f = w1 * scale[None, :]
    b1f = (b1 - params["running_mean"]) * scale + params["beta"]

    # Lane-dense padding: all contraction / result dims -> multiples of 128.
    Dp, Np, Cp = _round_up(D, 128), _round_up(Nb, 128), _round_up(C, 128)
    if Cp <= class_tile:
        TC = Cp
    else:
        TC = class_tile
        Cp = _round_up(Cp, TC)

    w1_p = jnp.zeros((Dp, Np), jnp.bfloat16).at[:D, :Nb].set(w1f.astype(jnp.bfloat16))
    b1_p = jnp.zeros((1, Np), jnp.float32).at[0, :Nb].set(b1f)
    w2_p = jnp.zeros((Np, Cp), jnp.bfloat16).at[:Nb, :C].set(w2.astype(jnp.bfloat16))
    b2_p = jnp.zeros((1, Cp), jnp.float32).at[0, :C].set(b2)

    return dict(w1=w1_p, b1=b1_p, w2=w2_p, b2=b2_p,
                dims=(D, Nb, C, Dp, Np, Cp, TC))


def classblock_forward(x, prepared, *, block_b=512, out_dtype=jnp.bfloat16):
    """x: (B, input_dim). prepared: output of prepare_classblock_params."""
    x = jnp.asarray(x)
    B, D = x.shape
    D0, Nb, C, Dp, Np, Cp, TC = prepared["dims"]
    assert D == D0, f"input_dim mismatch: {D} vs {D0}"

    TB = _choose_batch_tile(B, block_b)
    Bp = _round_up(B, TB)

    # Skip the activation pad copy when shapes already line up (common D % 128 == 0 case).
    if B == Bp and D == Dp:
        x_p = x.astype(jnp.bfloat16)
    else:
        x_p = jnp.zeros((Bp, Dp), jnp.bfloat16).at[:B, :D].set(x.astype(jnp.bfloat16))

    grid = (Bp // TB, Cp // TC)
    out_itemsize = jnp.dtype(out_dtype).itemsize

    # VMEM budget: single-buffered residents + double-buffered streamed tiles + scratch + margin.
    resident = Dp * Np * 2 + Np * 4                                    # folded W1 (bf16), b1 (f32)
    streamed = 2 * (TB * Dp * 2 + Np * TC * 2 + TC * 4 + TB * TC * out_itemsize)
    scratch = TB * Np * 2                                              # cached h (bf16)
    needed = resident + streamed + scratch + (4 << 20)                 # compiler-internal headroom
    try:
        vmem_cap = pltpu.get_tpu_info().vmem_capacity_bytes
    except Exception:
        vmem_cap = 64 << 20                                            # conservative (v7x) fallback
    ceiling = (vmem_cap * 7) // 8                                      # ~56 MiB v7x, ~112 MiB v5e/v6e
    vmem_bytes = int(min(max(needed, 16 << 20), ceiling))

    y_p = pl.pallas_call(
        classblock_kernel,
        out_shape=jax.ShapeDtypeStruct((Bp, Cp), out_dtype),
        grid=grid,
        in_specs=[
            # Streaming activations: one batch tile, invariant in the class axis (no re-DMA).
            pl.BlockSpec((TB, Dp), lambda i, j: (i, 0)),
            # Resident folded W1 / b1: fetched once, single-buffered.
            pl.BlockSpec((Dp, Np), lambda i, j: (0, 0), pipeline_mode=pl.Buffered(1)),
            pl.BlockSpec((1, Np),  lambda i, j: (0, 0), pipeline_mode=pl.Buffered(1)),
            # Class-tiled classifier weight / bias (streamed along j, double-buffered).
            pl.BlockSpec((Np, TC), lambda i, j: (0, j)),
            pl.BlockSpec((1, TC),  lambda i, j: (0, j)),
        ],
        out_specs=pl.BlockSpec((TB, TC), lambda i, j: (i, j)),
        scratch_shapes=[pltpu.VMEM((TB, Np), jnp.bfloat16)],            # cached bottleneck activations
        compiler_params=pltpu.CompilerParams(
            # Batch axis sharded across TensorCores; class axis sequential (scratch reuse).
            dimension_semantics=("parallel", "arbitrary"),
            vmem_limit_bytes=vmem_bytes,
        ),
    )(x_p, prepared["w1"], prepared["b1"], prepared["w2"], prepared["b2"])

    return y_p[:B, :C]


def init_classblock_params(key, input_dim, class_num, num_bottleneck):
    """Deterministic init mirroring weights_init_kaiming / weights_init_classifier."""
    k1, k2, k3 = jax.random.split(key, 3)

    # nn.Linear(input_dim, num_bottleneck): kaiming_normal_ fan_out
    std1 = (2.0 / num_bottleneck) ** 0.5
    w1 = jax.random.normal(k1, (input_dim, num_bottleneck), jnp.float32) * std1   # stored as W^T
    b1 = jnp.zeros((num_bottleneck,), jnp.float32)

    # BatchNorm1d: weight ~ N(1.0, 0.02), bias = 0, running_mean = 0, running_var = 1
    gamma = 1.0 + 0.02 * jax.random.normal(k2, (num_bottleneck,), jnp.float32)
    beta = jnp.zeros((num_bottleneck,), jnp.float32)
    running_mean = jnp.zeros((num_bottleneck,), jnp.float32)
    running_var = jnp.ones((num_bottleneck,), jnp.float32)

    # classifier nn.Linear(num_bottleneck, class_num): weight ~ N(0, 0.001), bias = 0
    w2 = 0.001 * jax.random.normal(k3, (num_bottleneck, class_num), jnp.float32)  # stored as W^T
    b2 = jnp.zeros((class_num,), jnp.float32)

    return dict(w1=w1, b1=b1, gamma=gamma, beta=beta,
                running_mean=running_mean, running_var=running_var,
                w2=w2, b2=b2)


if __name__ == "__main__":
    # Small shapes consistent with the module: x is (batch, input_dim)
    B, INPUT_DIM, NUM_BOTTLENECK, CLASS_NUM = 8, 32, 64, 16

    key = jax.random.PRNGKey(0)
    kx, kp = jax.random.split(key)
    x = jax.random.normal(kx, (B, INPUT_DIM), jnp.float32)
    params = init_classblock_params(kp, INPUT_DIM, CLASS_NUM, NUM_BOTTLENECK)

    prepared = prepare_classblock_params(params)      # one-time weight fold / pad / cast
    y = classblock_forward(x, prepared)
    jax.block_until_ready(y)

    # Pure-JAX f32 reference of the original eval-mode module math.
    h_ref = x @ params["w1"] + params["b1"]
    h_ref = (h_ref - params["running_mean"]) * jax.lax.rsqrt(
        params["running_var"] + BN_EPS) * params["gamma"] + params["beta"]
    y_ref = h_ref @ params["w2"] + params["b2"]

    assert y.shape == (B, CLASS_NUM)
    # bf16 MXU inputs / bf16 output with f32 accumulation -> relaxed tolerance vs. f32 reference.
    err = float(jnp.max(jnp.abs(y.astype(jnp.float32) - y_ref)))
    assert jnp.allclose(y.astype(jnp.float32), y_ref, atol=5e-3, rtol=5e-2), err

    print("KERNEL_OK")
</pallas_src>

<mosaic_0001>
module attributes {stable_mosaic.version = 11 : i64} {
  func.func @classblock_kernel(%arg0: i32, %arg1: i32, %arg2: memref<8x128xbf16, #tpu.memory_space<vmem>>, %arg3: memref<128x128xbf16, #tpu.memory_space<vmem>>, %arg4: memref<1x128xf32, #tpu.memory_space<vmem>>, %arg5: memref<128x128xbf16, #tpu.memory_space<vmem>>, %arg6: memref<1x128xf32, #tpu.memory_space<vmem>>, %arg7: memref<8x128xbf16, #tpu.memory_space<vmem>>, %arg8: memref<8x128xbf16, #tpu.memory_space<vmem>>) attributes {dimension_semantics = [#tpu.dimension_semantics<parallel>, #tpu.dimension_semantics<arbitrary>], iteration_bounds = array<i64: 1, 1>, scalar_prefetch = 0 : i64, scratch_operands = 1 : i64, tpu.core_type = #tpu.core_type<tc>, window_params = [{transform_indices = @transform_0, window_bounds = array<i64: 8, 128>}, {pipeline_mode = #tpu.pipeline_mode<synchronous>, transform_indices = @transform_1, window_bounds = array<i64: 128, 128>}, {pipeline_mode = #tpu.pipeline_mode<synchronous>, transform_indices = @transform_2, window_bounds = array<i64: 1, 128>}, {transform_indices = @transform_3, window_bounds = array<i64: 128, 128>}, {transform_indices = @transform_4, window_bounds = array<i64: 1, 128>}, {transform_indices = @transform_5, window_bounds = array<i64: 8, 128>}]} {
    %c0_i32 = arith.constant 0 : i32
    %0 = arith.cmpi eq, %arg1, %c0_i32 : i32
    %1 = arith.extui %0 : i1 to i32
    %c0_i32_0 = arith.constant 0 : i32
    %2 = arith.cmpi ne, %1, %c0_i32_0 : i32
    scf.if %2 {
      %c0_8 = arith.constant 0 : index
      %c0_9 = arith.constant 0 : index
      %11 = vector.load %arg2[%c0_8, %c0_9] : memref<8x128xbf16, #tpu.memory_space<vmem>>, vector<8x128xbf16>
      %c0_10 = arith.constant 0 : index
      %c0_11 = arith.constant 0 : index
      %12 = vector.load %arg3[%c0_10, %c0_11] : memref<128x128xbf16, #tpu.memory_space<vmem>>, vector<128x128xbf16>
      %cst_12 = arith.constant dense<0.000000e+00> : vector<8x128xf32>
      %13 = tpu.matmul %11, %12, %cst_12 {dimension_numbers = #tpu.dot_dimension_numbers<[1], [0], [0], [1], [0, 0, 1, 1], [], []>} : vector<8x128xbf16>, vector<128x128xbf16>, vector<8x128xf32> -> vector<8x128xf32>
      %c0_13 = arith.constant 0 : index
      %c0_14 = arith.constant 0 : index
      %14 = vector.load %arg4[%c0_13, %c0_14] : memref<1x128xf32, #tpu.memory_space<vmem>>, vector<1x128xf32>
      %15 = vector.broadcast %14 : vector<1x128xf32> to vector<8x128xf32>
      %16 = arith.addf %13, %15 : vector<8x128xf32>
      %17 = arith.truncf %16 : vector<8x128xf32> to vector<8x128xbf16>
      %c0_15 = arith.constant 0 : index
      %c0_16 = arith.constant 0 : index
      %18 = vector.load %arg8[%c0_15, %c0_16] : memref<8x128xbf16, #tpu.memory_space<vmem>>, vector<8x128xbf16>
      tpu.vector_store %arg8[%c0_15, %c0_16], %17 {strides = array<i32>} : memref<8x128xbf16, #tpu.memory_space<vmem>>, vector<8x128xbf16>,
    } else {
    }
    %c0 = arith.constant 0 : index
    %c0_1 = arith.constant 0 : index
    %3 = vector.load %arg8[%c0, %c0_1] : memref<8x128xbf16, #tpu.memory_space<vmem>>, vector<8x128xbf16>
    %c0_2 = arith.constant 0 : index
    %c0_3 = arith.constant 0 : index
    %4 = vector.load %arg5[%c0_2, %c0_3] : memref<128x128xbf16, #tpu.memory_space<vmem>>, vector<128x128xbf16>
    %cst = arith.constant dense<0.000000e+00> : vector<8x128xf32>
    %5 = tpu.matmul %3, %4, %cst {dimension_numbers = #tpu.dot_dimension_numbers<[1], [0], [0], [1], [0, 0, 1, 1], [], []>} : vector<8x128xbf16>, vector<128x128xbf16>, vector<8x128xf32> -> vector<8x128xf32>
    %c0_4 = arith.constant 0 : index
    %c0_5 = arith.constant 0 : index
    %6 = vector.load %arg6[%c0_4, %c0_5] : memref<1x128xf32, #tpu.memory_space<vmem>>, vector<1x128xf32>
    %7 = vector.broadcast %6 : vector<1x128xf32> to vector<8x128xf32>
    %8 = arith.addf %5, %7 : vector<8x128xf32>
    %9 = arith.truncf %8 : vector<8x128xf32> to vector<8x128xbf16>
    %c0_6 = arith.constant 0 : index
    %c0_7 = arith.constant 0 : index
    %10 = vector.load %arg7[%c0_6, %c0_7] : memref<8x128xbf16, #tpu.memory_space<vmem>>, vector<8x128xbf16>
    tpu.vector_store %arg7[%c0_6, %c0_7], %9 {strides = array<i32>} : memref<8x128xbf16, #tpu.memory_space<vmem>>, vector<8x128xbf16>,
    return
  }
  func.func @transform_0(%arg0: i32, %arg1: i32) -> (i32, i32) {
    %c0_i32 = arith.constant 0 : i32
    %c0_i32_0 = arith.constant 0 : i32
    return %arg0, %c0_i32 : i32, i32
  }
  func.func @transform_1(%arg0: i32, %arg1: i32) -> (i32, i32) {
    %c0_i32 = arith.constant 0 : i32
    %c0_i32_0 = arith.constant 0 : i32
    %c0_i32_1 = arith.constant 0 : i32
    return %c0_i32, %c0_i32_0 : i32, i32
  }
  func.func @transform_2(%arg0: i32, %arg1: i32) -> (i32, i32) {
    %c0_i32 = arith.constant 0 : i32
    %c0_i32_0 = arith.constant 0 : i32
    %c0_i32_1 = arith.constant 0 : i32
    return %c0_i32, %c0_i32_0 : i32, i32
  }
  func.func @transform_3(%arg0: i32, %arg1: i32) -> (i32, i32) {
    %c0_i32 = arith.constant 0 : i32
    %c0_i32_0 = arith.constant 0 : i32
    return %c0_i32, %arg1 : i32, i32
  }
  func.func @transform_4(%arg0: i32, %arg1: i32) -> (i32, i32) {
    %c0_i32 = arith.constant 0 : i32
    %c0_i32_0 = arith.constant 0 : i32
    return %c0_i32, %arg1 : i32, i32
  }
  func.func @transform_5(%arg0: i32, %arg1: i32) -> (i32, i32) {
    %c0_i32 = arith.constant 0 : i32
    return %arg0, %arg1 : i32, i32
  }
}

</mosaic_0001>

<llo_original>
// kernel: tpu_custom_call.1
$region0: #{tpu_custom_call.1}
  #allocation0 [shape = 'u32[]', space=smem, size = 0x4, offset = 0x4, fixed_abs, tag = 'smem constant byte address 0x4 - core index']
  #allocation1 [shape = 'u32[144,128]{1,0:T(1,128)}', space=vmem, size = 0x12000, scoped, tag = 'internal scratch']
  #allocation2 [shape = 'bf16[8,128]{1,0:T(8,128)(2,1)}', space=vmem, size = 0x800, scoped, tag = 'scratch operand']
  %s0 = inlined_call_operand.hbm [shape: bf16[8,128], index: 0, kind: input, shape index: {}]
  %s1 = inlined_call_operand.hbm [shape: bf16[128,128], index: 1, kind: input, shape index: {}]
  %s2 = inlined_call_operand.vmem [shape: f32[1,128], index: 2, kind: input, shape index: {}]
  %s3 = inlined_call_operand.hbm [shape: bf16[128,128], index: 3, kind: input, shape index: {}]
  %s4 = inlined_call_operand.vmem [shape: f32[1,128], index: 4, kind: input, shape index: {}]
  %s5 = inlined_call_operand.hbm [shape: bf16[8,128], index: 5, kind: output, shape index: {}]
  %s6 = sld [smem:[#allocation0]]
  $region46: #{tpu_custom_call.1} parent=0
    _
  %s8 = ssub.s32 1, %s6
  %s9 = scalar_select 0, %s8, %s6
  $region1: #{tpu_custom_call.1} parent=0
    #allocation3 [shape = 'u8[2048]{0}', space=vmem, size = 0x800, scoped, tag = 'input window, operand 0, single buffered']
    #allocation4 [shape = 's32[1]{0}', space=sflag, size = 0x4, scoped, tag = 'scoped memory for tpu_custom_call.1']
    #allocation5 [shape = 's32[1]{0}', space=sflag, size = 0x4, scoped, tag = 'scoped memory for tpu_custom_call.1']
    #allocation6 [shape = 'u8[32768]{0}', space=vmem, size = 0x8000, scoped, tag = 'input window, operand 1, single buffered']
    #allocation7 [shape = 's32[1]{0}', space=sflag, size = 0x4, scoped, tag = 'scoped memory for tpu_custom_call.1']
    #allocation8 [shape = 'u8[32768]{0}', space=vmem, size = 0x8000, scoped, tag = 'input window, operand 3, single buffered']
    #allocation9 [shape = 'u8[2048]{0}', space=vmem, size = 0x800, scoped, tag = 'output window, operand 0, single buffered']
    %10 = vsyncpa [#allocation4], 0
    %11 = vsyncpa [#allocation7], 0
    %12 = vsyncpa [#allocation5], 0
    // Predicated region
    $region2: #{tpu_custom_call.1} parent=1 // pred_check
      _
    $region3: #{tpu_custom_call.1} parent=1 // pred_check_branch
      %14 = sbr.rel (0) target = $region5
    $region4: #{tpu_custom_call.1} parent=1 // pred_region
      %s16 = ssub.s32 64, 64
      %17 = vsyncadd [#allocation4], %s16
      %s19 = sshll.u32 [#allocation3], 4
      %s20 = int_to_ptr.vmem [resolvable:$true] %s19
      %22 = dma.hbm_to_vmem [thread:$0]  %s0, 64, %s20, [#allocation4]
    $region5: #{tpu_custom_call.1} parent=1 // pred_fallthru
      _
    // Predicated region
    $region6: #{tpu_custom_call.1} parent=1 // pred_check
      _
    $region7: #{tpu_custom_call.1} parent=1 // pred_check_branch
      %24 = sbr.rel (0) target = $region9
    $region8: #{tpu_custom_call.1} parent=1 // pred_region
      %s26 = ssub.s32 1024, 1024
      %27 = vsyncadd [#allocation7], %s26
      %s28 = sshll.u32 [#allocation6], 4
      %s29 = int_to_ptr.vmem [resolvable:$true] %s28
      %34 = dma.hbm_to_vmem [thread:$0]  %s1, 1024, %s29, [#allocation7], 64, 64, 4
    $region9: #{tpu_custom_call.1} parent=1 // pred_fallthru
      _
    // Predicated region
    $region10: #{tpu_custom_call.1} parent=1 // pred_check
      _
    $region11: #{tpu_custom_call.1} parent=1 // pred_check_branch
      %36 = sbr.rel (0) target = $region13
    $region12: #{tpu_custom_call.1} parent=1 // pred_region
      _
    $region13: #{tpu_custom_call.1} parent=1 // pred_fallthru
      _
    // Predicated region
    $region14: #{tpu_custom_call.1} parent=1 // pred_check
      _
    $region15: #{tpu_custom_call.1} parent=1 // pred_check_branch
      %38 = sbr.rel (0) target = $region17
    $region16: #{tpu_custom_call.1} parent=1 // pred_region
      %s40 = ssub.s32 1024, 1024
      %41 = vsyncadd [#allocation7], %s40
      %s42 = sshll.u32 [#allocation8], 4
      %s43 = int_to_ptr.vmem [resolvable:$true] %s42
      %48 = dma.hbm_to_vmem [thread:$0]  %s3, 1024, %s43, [#allocation7], 64, 64, 4
    $region17: #{tpu_custom_call.1} parent=1 // pred_fallthru
      _
    // Predicated region
    $region18: #{tpu_custom_call.1} parent=1 // pred_check
      _
    $region19: #{tpu_custom_call.1} parent=1 // pred_check_branch
      %50 = sbr.rel (0) target = $region21
    $region20: #{tpu_custom_call.1} parent=1 // pred_region
      _
    $region21: #{tpu_custom_call.1} parent=1 // pred_fallthru
      _
    // Predicated region
    $region22: #{tpu_custom_call.1} parent=1 // pred_check
      _
    $region23: #{tpu_custom_call.1} parent=1 // pred_check_branch
      %52 = sbr.rel (0) target = $region25
    $region24: #{tpu_custom_call.1} parent=1 // pred_region
      %53 = dma.done [#allocation4], 64
    $region25: #{tpu_custom_call.1} parent=1 // pred_fallthru
      _
    // Predicated region
    $region26: #{tpu_custom_call.1} parent=1 // pred_check
      _
    $region27: #{tpu_custom_call.1} parent=1 // pred_check_branch
      %55 = sbr.rel (0) target = $region29
    $region28: #{tpu_custom_call.1} parent=1 // pred_region
      %56 = dma.done [#allocation7], 1024
    $region29: #{tpu_custom_call.1} parent=1 // pred_fallthru
      _
    // Predicated region
    $region30: #{tpu_custom_call.1} parent=1 // pred_check
      _
    $region31: #{tpu_custom_call.1} parent=1 // pred_check_branch
      %58 = sbr.rel (0) target = $region33
    $region32: #{tpu_custom_call.1} parent=1 // pred_region
      %59 = dma.done [#allocation7], 1024
    $region33: #{tpu_custom_call.1} parent=1 // pred_fallthru
      _
    %p61 = scmp.eq.s32.totalorder 0, 0
    // Predicated region
    $region34: #{tpu_custom_call.1} parent=1 // pred_check
      %p62 = pneg %p61
    $region35: #{tpu_custom_call.1} parent=1 // pred_check_branch
      %64 = sbr.rel (%p62) target = $region37
    $region36: #{tpu_custom_call.1} parent=1 // pred_region
      %v65 = vld [vmem:[#allocation3] sm:$0xf]
      %v66 = vld [vmem:[#allocation6] sm:$0xf]
      %v67 = vld [vmem:[#allocation6 + $0x4] sm:$0xf]
      %v68 = vld [vmem:[#allocation6 + $0x8] sm:$0xf]
      %v69 = vld [vmem:[#allocation6 + $0xc] sm:$0xf]
      %v70 = vld [vmem:[#allocation6 + $0x10] sm:$0xf]
      %v71 = vld [vmem:[#allocation6 + $0x14] sm:$0xf]
      %v72 = vld [vmem:[#allocation6 + $0x18] sm:$0xf]
      %v73 = vld [vmem:[#allocation6 + $0x1c] sm:$0xf]
      %v74 = vld [vmem:[#allocation6 + $0x20] sm:$0xf]
      %v75 = vld [vmem:[#allocation6 + $0x24] sm:$0xf]
      %v76 = vld [vmem:[#allocation6 + $0x28] sm:$0xf]
      %v77 = vld [vmem:[#allocation6 + $0x2c] sm:$0xf]
      %v78 = vld [vmem:[#allocation6 + $0x30] sm:$0xf]
      %v79 = vld [vmem:[#allocation6 + $0x34] sm:$0xf]
      %v80 = vld [vmem:[#allocation6 + $0x38] sm:$0xf]
      %v81 = vld [vmem:[#allocation6 + $0x3c] sm:$0xf]
      %v82 = vld [vmem:[%s2] sm:$0x1]
      %v84 = vlaneseq
      %v85 = vshrl.u32 %v84, 7
      %v86 = vsub.s32 0, %v85
      %v87 = vrot.slane %v82, %v86
      %v105 = vunpack.c.l.b16 %v66
      %v106 = vunpack.c.l.b16 %v67
      %v107 = vunpack.c.l.b16 %v68
      %v108 = vunpack.c.l.b16 %v69
      %v109 = vunpack.c.l.b16 %v70
      %v110 = vunpack.c.l.b16 %v71
      %v111 = vunpack.c.l.b16 %v72
      %v112 = vunpack.c.l.b16 %v73
      %v113 = vunpack.c.l.b16 %v74
      %v114 = vunpack.c.l.b16 %v75
      %v115 = vunpack.c.l.b16 %v76
      %v116 = vunpack.c.l.b16 %v77
      %v117 = vunpack.c.l.b16 %v78
      %v118 = vunpack.c.l.b16 %v79
      %v119 = vunpack.c.l.b16 %v80
      %v120 = vunpack.c.l.b16 %v81
      %v121 = vpack.c.b16 %v106, %v105
      %v122 = vpack.c.b16 %v108, %v107
      %v123 = vpack.c.b16 %v110, %v109
      %v124 = vpack.c.b16 %v112, %v111
      %v125 = vpack.c.b16 %v114, %v113
      %v126 = vpack.c.b16 %v116, %v115
      %v127 = vpack.c.b16 %v118, %v117
      %v128 = vpack.c.b16 %v120, %v119
      %137 = vmatprep.subr.bf16.mxu0 0
      %138 = vmatpush1.bf16.msra.mxu0 %v121
      %139 = vmatprep.subr.bf16.mxu0 0
      %140 = vmatpush1.bf16.msra.mxu0 %v122
      %141 = vmatprep.subr.bf16.mxu0 0
      %142 = vmatpush1.bf16.msra.mxu0 %v123
      %143 = vmatprep.subr.bf16.mxu0 0
      %144 = vmatpush1.bf16.msra.mxu0 %v124
      %145 = vmatprep.subr.bf16.mxu0 0
      %146 = vmatpush1.bf16.msra.mxu0 %v125
      %147 = vmatprep.subr.bf16.mxu0 0
      %148 = vmatpush1.bf16.msra.mxu0 %v126
      %149 = vmatprep.subr.bf16.mxu0 0
      %150 = vmatpush1.bf16.msra.mxu0 %v127
      %151 = vmatprep.subr.bf16.mxu0 0
      %152 = vmatpush1.bf16.msra.mxu0 %v128
      %153 = vmatprep.subr.bf16.mxu0 0
      %154 = vmatpush1.bf16.msra.mxu0 0
      %155 = vmatprep.subr.bf16.mxu0 0
      %156 = vmatpush1.bf16.msra.mxu0 0
      %157 = vmatprep.subr.bf16.mxu0 0
      %158 = vmatpush1.bf16.msra.mxu0 0
      %159 = vmatprep.subr.bf16.mxu0 0
      %160 = vmatpush1.bf16.msra.mxu0 0
      %161 = vmatprep.subr.bf16.mxu0 0
      %162 = vmatpush1.bf16.msra.mxu0 0
      %163 = vmatprep.subr.bf16.mxu0 0
      %164 = vmatpush1.bf16.msra.mxu0 0
      %165 = vmatprep.subr.bf16.mxu0 0
      %166 = vmatpush1.bf16.msra.mxu0 0
      %167 = vmatprep.subr.bf16.mxu0 0
      %168 = vmatpush1.bf16.msra.mxu0 0
      %169 = vmatprep.mubr.bf16.mxu0 0
      %170 = vmatmul.mubr.bf16.gmra.mrb[0].mxu0 %v65
      %v171 = vpop.f32.mrb[0].mxu0
      %v172 = vadd.f32 %v87, %v171
      %v173 = vpop.f32.mrb[0].mxu0
      %v174 = vpop.f32.mrb[0].mxu0
      %v175 = vpop.f32.mrb[0].mxu0
      %176 = vdwg.mxu0
      %v177 = vpack.c.bf16 %v172, %v172
      %178 = vst [vmem:[#allocation2] sm:$0xf] %v177
    $region37: #{tpu_custom_call.1} parent=1 // pred_fallthru
      _
    %v179 = vld [vmem:[#allocation2] sm:$0xf]
    %v180 = vld [vmem:[#allocation8] sm:$0xf]
    %v181 = vld [vmem:[#allocation8 + $0x4] sm:$0xf]
    %v182 = vld [vmem:[#allocation8 + $0x8] sm:$0xf]
    %v183 = vld [vmem:[#allocation8 + $0xc] sm:$0xf]
    %v184 = vld [vmem:[#allocation8 + $0x10] sm:$0xf]
    %v185 = vld [vmem:[#allocation8 + $0x14] sm:$0xf]
    %v186 = vld [vmem:[#allocation8 + $0x18] sm:$0xf]
    %v187 = vld [vmem:[#allocation8 + $0x1c] sm:$0xf]
    %v188 = vld [vmem:[#allocation8 + $0x20] sm:$0xf]
    %v189 = vld [vmem:[#allocation8 + $0x24] sm:$0xf]
    %v190 = vld [vmem:[#allocation8 + $0x28] sm:$0xf]
    %v191 = vld [vmem:[#allocation8 + $0x2c] sm:$0xf]
    %v192 = vld [vmem:[#allocation8 + $0x30] sm:$0xf]
    %v193 = vld [vmem:[#allocation8 + $0x34] sm:$0xf]
    %v194 = vld [vmem:[#allocation8 + $0x38] sm:$0xf]
    %v195 = vld [vmem:[#allocation8 + $0x3c] sm:$0xf]
    %v196 = vld [vmem:[%s4] sm:$0x1]
    %v198 = vlaneseq
    %v199 = vshrl.u32 %v198, 7
    %v200 = vsub.s32 0, %v199
    %v201 = vrot.slane %v196, %v200
    %v219 = vunpack.c.l.b16 %v180
    %v220 = vunpack.c.l.b16 %v181
    %v221 = vunpack.c.l.b16 %v182
    %v222 = vunpack.c.l.b16 %v183
    %v223 = vunpack.c.l.b16 %v184
    %v224 = vunpack.c.l.b16 %v185
    %v225 = vunpack.c.l.b16 %v186
    %v226 = vunpack.c.l.b16 %v187
    %v227 = vunpack.c.l.b16 %v188
    %v228 = vunpack.c.l.b16 %v189
    %v229 = vunpack.c.l.b16 %v190
    %v230 = vunpack.c.l.b16 %v191
    %v231 = vunpack.c.l.b16 %v192
    %v232 = vunpack.c.l.b16 %v193
    %v233 = vunpack.c.l.b16 %v194
    %v234 = vunpack.c.l.b16 %v195
    %v235 = vpack.c.b16 %v220, %v219
    %v236 = vpack.c.b16 %v222, %v221
    %v237 = vpack.c.b16 %v224, %v223
    %v238 = vpack.c.b16 %v226, %v225
    %v239 = vpack.c.b16 %v228, %v227
    %v240 = vpack.c.b16 %v230, %v229
    %v241 = vpack.c.b16 %v232, %v231
    %v242 = vpack.c.b16 %v234, %v233
    %251 = vmatprep.subr.bf16.mxu0 0
    %252 = vmatpush1.bf16.msra.mxu0 %v235
    %253 = vmatprep.subr.bf16.mxu0 0
    %254 = vmatpush1.bf16.msra.mxu0 %v236
    %255 = vmatprep.subr.bf16.mxu0 0
    %256 = vmatpush1.bf16.msra.mxu0 %v237
    %257 = vmatprep.subr.bf16.mxu0 0
    %258 = vmatpush1.bf16.msra.mxu0 %v238
    %259 = vmatprep.subr.bf16.mxu0 0
    %260 = vmatpush1.bf16.msra.mxu0 %v239
    %261 = vmatprep.subr.bf16.mxu0 0
    %262 = vmatpush1.bf16.msra.mxu0 %v240
    %263 = vmatprep.subr.bf16.mxu0 0
    %264 = vmatpush1.bf16.msra.mxu0 %v241
    %265 = vmatprep.subr.bf16.mxu0 0
    %266 = vmatpush1.bf16.msra.mxu0 %v242
    %267 = vmatprep.subr.bf16.mxu0 0
    %268 = vmatpush1.bf16.msra.mxu0 0
    %269 = vmatprep.subr.bf16.mxu0 0
    %270 = vmatpush1.bf16.msra.mxu0 0
    %271 = vmatprep.subr.bf16.mxu0 0
    %272 = vmatpush1.bf16.msra.mxu0 0
    %273 = vmatprep.subr.bf16.mxu0 0
    %274 = vmatpush1.bf16.msra.mxu0 0
    %275 = vmatprep.subr.bf16.mxu0 0
    %276 = vmatpush1.bf16.msra.mxu0 0
    %277 = vmatprep.subr.bf16.mxu0 0
    %278 = vmatpush1.bf16.msra.mxu0 0
    %279 = vmatprep.subr.bf16.mxu0 0
    %280 = vmatpush1.bf16.msra.mxu0 0
    %281 = vmatprep.subr.bf16.mxu0 0
    %282 = vmatpush1.bf16.msra.mxu0 0
    %283 = vmatprep.mubr.bf16.mxu0 0
    %284 = vmatmul.mubr.bf16.gmra.mrb[0].mxu0 %v179
    %v285 = vpop.f32.mrb[0].mxu0
    %v286 = vadd.f32 %v201, %v285
    %v287 = vpop.f32.mrb[0].mxu0
    %v288 = vpop.f32.mrb[0].mxu0
    %v289 = vpop.f32.mrb[0].mxu0
    %290 = vdwg.mxu0
    %v291 = vpack.c.bf16 %v286, %v286
    %292 = vst [vmem:[#allocation9] sm:$0xf] %v291
    // Predicated region
    $region38: #{tpu_custom_call.1} parent=1 // pred_check
      _
    $region39: #{tpu_custom_call.1} parent=1 // pred_check_branch
      %294 = sbr.rel (0) target = $region41
    $region40: #{tpu_custom_call.1} parent=1 // pred_region
      %s296 = ssub.s32 64, 64
      %297 = vsyncadd [#allocation5], %s296
      %s299 = sshll.u32 [#allocation9], 4
      %s300 = int_to_ptr.vmem [resolvable:$true] %s299
      %302 = dma.vmem_to_hbm [thread:$0]  %s300, 64, %s5, [#allocation5]
    $region41: #{tpu_custom_call.1} parent=1 // pred_fallthru
      _
    // Predicated region
    $region42: #{tpu_custom_call.1} parent=1 // pred_check
      _
    $region43: #{tpu_custom_call.1} parent=1 // pred_check_branch
      %304 = sbr.rel (0) target = $region45
    $region44: #{tpu_custom_call.1} parent=1 // pred_region
      %305 = dma.done [#allocation5], 64
    $region45: #{tpu_custom_call.1} parent=1 // pred_fallthru
      _
    %306 = vsyncpa [#allocation4], 1
    %307 = vsyncpa [#allocation7], 1
    %308 = vsyncpa [#allocation5], 1

</llo_original>
